<compile_context>
chip_gen: v7x
topology: tpu7x:2x2x1
jax: 0.10.0
libtpu: 0.0.40
codegen_flags: <defaults>
</compile_context>

<pallas_src>
import functools

import jax
import jax.numpy as jnp
from jax import lax
from jax.experimental import pallas as pl
from jax.experimental.pallas import tpu as pltpu

LN_EPS = 1e-5   # PyTorch nn.LayerNorm default
LANE = 128
SUBLANE = 8


def _round_up(n, m):
    return (n + m - 1) // m * m


def _residual_block_kernel(mask_ref, x_ref, gamma_ref, beta_ref,
                           w1_ref, b1_ref, w2_ref, b2_ref, o_ref,
                           *, inv_dim):
    """One (tile_rows, Dp) row tile of: out = x + relu(relu(LN(x)@W1+b1)@W2+b2).

    The feature dim may be zero-padded to a multiple of 128 lanes; mask_ref is
    1.0 on real lanes / 0.0 on padding and inv_dim = 1/real_dim so the
    LayerNorm statistics ignore the padding.  gamma/beta/biases/weights are
    zero-padded, so padded lanes stay exactly zero through the whole block.
    """
    x = x_ref[...].astype(jnp.float32)            # (TR, Dp)
    mask = mask_ref[...]                          # (1, Dp) f32

    # --- LayerNorm over the real feature lanes (two-pass, biased variance) ---
    mean = jnp.sum(x, axis=-1, keepdims=True) * inv_dim     # pads contribute 0
    d = (x - mean) * mask                                    # zero pad lanes
    var = jnp.sum(d * d, axis=-1, keepdims=True) * inv_dim
    xn = d * lax.rsqrt(var + LN_EPS) * gamma_ref[...] + beta_ref[...]

    # --- Linear1 + ReLU (Dropout = identity in eval mode) ---
    h = jnp.dot(xn.astype(w1_ref.dtype), w1_ref[...],
                preferred_element_type=jnp.float32)
    h = jnp.maximum(h + b1_ref[...], 0.0)

    # --- Linear2 + ReLU (Dropout = identity in eval mode) ---
    h = jnp.dot(h.astype(w2_ref.dtype), w2_ref[...],
                preferred_element_type=jnp.float32)
    h = jnp.maximum(h + b2_ref[...], 0.0)

    # --- residual add ---
    o_ref[...] = (x + h).astype(o_ref.dtype)


def _make_call(*, rows_p, dp, tr, out_dtype, x_itemsize, w_itemsize, inv_dim,
               flops, transcendentals, bytes_accessed, single_buffer_weights):
    vec_spec = pl.BlockSpec((1, dp), lambda i: (0, 0))

    if single_buffer_weights:
        # Weight blocks never change across the grid -> one VMEM buffer each.
        w_spec = pl.BlockSpec((dp, dp), lambda i: (0, 0),
                              pipeline_mode=pl.Buffered(1))
        w_bufs = 1
    else:
        w_spec = pl.BlockSpec((dp, dp), lambda i: (0, 0))
        w_bufs = 2

    # Explicit VMEM budget: double-buffered x/out tiles + weight buffers +
    # small vector params, plus headroom. Defaults (16/32 MiB scoped) are too
    # small once tile_rows / dim grow.
    vmem_bytes = (2 * tr * dp * x_itemsize                       # x (2 bufs)
                  + 2 * tr * dp * jnp.dtype(out_dtype).itemsize  # out (2 bufs)
                  + 2 * w_bufs * dp * dp * w_itemsize            # W1^T, W2^T
                  + 2 * 5 * dp * 4)                              # vec params
    vmem_limit = min(int(vmem_bytes) + (16 << 20), 128 << 20)

    kernel = functools.partial(_residual_block_kernel, inv_dim=inv_dim)
    return pl.pallas_call(
        kernel,
        out_shape=jax.ShapeDtypeStruct((rows_p, dp), out_dtype),
        grid_spec=pltpu.PrefetchScalarGridSpec(
            num_scalar_prefetch=0,
            grid=(rows_p // tr,),
            in_specs=[
                vec_spec,                                   # lane mask
                pl.BlockSpec((tr, dp), lambda i: (i, 0)),   # x
                vec_spec,                                   # gamma
                vec_spec,                                   # beta
                w_spec,                                     # W1^T
                vec_spec,                                   # b1
                w_spec,                                     # W2^T
                vec_spec,                                   # b2
            ],
            out_specs=pl.BlockSpec((tr, dp), lambda i: (i, 0)),
        ),
        compiler_params=pltpu.CompilerParams(
            dimension_semantics=("parallel",),   # shards rows across TCs (v7x)
            vmem_limit_bytes=vmem_limit),
        cost_estimate=pl.CostEstimate(
            flops=flops,
            transcendentals=transcendentals,
            bytes_accessed=bytes_accessed),
    )


# Flipped to False (once) if this jax/TPU combo rejects pl.Buffered(1).
_SINGLE_BUFFER_WEIGHTS_OK = True


def residual_block(x, gamma, beta, w1, b1, w2, b2, *, tile_rows=256):
    """x: [..., dim] feature-last. Params follow PyTorch Linear(out,in) layout;
    we pass W.T (zero-padded) so the kernel does row @ (dim_in_p, dim_out_p)."""
    global _SINGLE_BUFFER_WEIGHTS_OK

    orig_shape = x.shape
    dim = orig_shape[-1]
    rows = 1
    for s in orig_shape[:-1]:
        rows *= s

    dp = _round_up(dim, LANE)                                  # lane-dense
    tr = min(_round_up(tile_rows, SUBLANE), _round_up(rows, SUBLANE))
    rows_p = _round_up(rows, tr)                               # row padding

    x2 = x.reshape(rows, dim)
    x2p = jnp.pad(x2, ((0, rows_p - rows), (0, dp - dim)))     # zero pad

    def pad_vec(v):
        return jnp.pad(v, (0, dp - dim)).reshape(1, dp)

    mask2 = pad_vec(jnp.ones((dim,), jnp.float32))
    gamma2, beta2 = pad_vec(gamma), pad_vec(beta)
    b1p, b2p = pad_vec(b1), pad_vec(b2)
    # PyTorch nn.Linear weight layout is (out, in): transpose then zero-pad.
    w1p = jnp.pad(w1.T, ((0, dp - dim), (0, dp - dim)))
    w2p = jnp.pad(w2.T, ((0, dp - dim), (0, dp - dim)))

    flops = 4 * rows * dim * dim + 10 * rows * dim
    bytes_accessed = (2 * rows * dim * x.dtype.itemsize
                      + 2 * dim * dim * w1.dtype.itemsize
                      + 4 * dim * 4)

    args = (mask2, x2p, gamma2, beta2, w1p, b1p, w2p, b2p)
    common = dict(rows_p=rows_p, dp=dp, tr=tr, out_dtype=x.dtype,
                  x_itemsize=x.dtype.itemsize, w_itemsize=w1.dtype.itemsize,
                  inv_dim=1.0 / dim, flops=flops, transcendentals=rows,
                  bytes_accessed=bytes_accessed)

    out = None
    if _SINGLE_BUFFER_WEIGHTS_OK:
        try:
            out = jax.block_until_ready(
                _make_call(single_buffer_weights=True, **common)(*args))
        except Exception:
            # pl.Buffered(1) not supported here; fall back to default buffering.
            _SINGLE_BUFFER_WEIGHTS_OK = False
    if out is None:
        out = _make_call(single_buffer_weights=False, **common)(*args)

    return out[:rows, :dim].reshape(orig_shape)


def reference(x, gamma, beta, w1, b1, w2, b2):
    """Pure-JAX reference mirroring the PyTorch forward (eval mode)."""
    xf = x.astype(jnp.float32)
    mean = jnp.mean(xf, axis=-1, keepdims=True)
    var = jnp.mean((xf - mean) ** 2, axis=-1, keepdims=True)
    xn = (xf - mean) / jnp.sqrt(var + LN_EPS) * gamma + beta
    h = jnp.maximum(xn @ w1.T + b1, 0.0)
    h = jnp.maximum(h @ w2.T + b2, 0.0)
    return (xf + h).astype(x.dtype)


if __name__ == "__main__":
    # Small shapes implied by the module: features along last dim.
    batch, seq, dim = 2, 8, 32
    key = jax.random.PRNGKey(0)
    kx, k1, k2, k3, k4 = jax.random.split(key, 5)

    x = jax.random.normal(kx, (batch, seq, dim), dtype=jnp.float32)

    # Deterministic parameter init (synthetic; not a checkpoint load).
    gamma = jnp.ones((dim,), jnp.float32)
    beta = jnp.zeros((dim,), jnp.float32)
    # PyTorch nn.Linear weight layout: (out_features, in_features)
    w1 = jax.random.normal(k1, (dim, dim), dtype=jnp.float32) * (1.0 / jnp.sqrt(dim))
    b1 = jax.random.normal(k2, (dim,), dtype=jnp.float32) * 0.01
    w2 = jax.random.normal(k3, (dim, dim), dtype=jnp.float32) * (1.0 / jnp.sqrt(dim))
    b2 = jax.random.normal(k4, (dim,), dtype=jnp.float32) * 0.01

    out = residual_block(x, gamma, beta, w1, b1, w2, b2)
    out = jax.block_until_ready(out)

    ref = reference(x, gamma, beta, w1, b1, w2, b2)
    assert out.shape == x.shape and out.dtype == x.dtype
    assert jnp.allclose(out, ref, atol=1e-4, rtol=1e-4), "mismatch vs reference"

    print("KERNEL_OK")
</pallas_src>

<mosaic_0001>
module attributes {stable_mosaic.version = 11 : i64} {
  func.func @_residual_block_kernel(%arg0: i32, %arg1: memref<1x128xf32, #tpu.memory_space<vmem>>, %arg2: memref<16x128xf32, #tpu.memory_space<vmem>>, %arg3: memref<1x128xf32, #tpu.memory_space<vmem>>, %arg4: memref<1x128xf32, #tpu.memory_space<vmem>>, %arg5: memref<128x128xf32, #tpu.memory_space<vmem>>, %arg6: memref<1x128xf32, #tpu.memory_space<vmem>>, %arg7: memref<128x128xf32, #tpu.memory_space<vmem>>, %arg8: memref<1x128xf32, #tpu.memory_space<vmem>>, %arg9: memref<16x128xf32, #tpu.memory_space<vmem>>) attributes {dimension_semantics = [#tpu.dimension_semantics<parallel>], iteration_bounds = array<i64: 1>, scalar_prefetch = 0 : i64, scratch_operands = 0 : i64, tpu.core_type = #tpu.core_type<tc>, window_params = [{pipeline_mode = #tpu.pipeline_mode<synchronous>, transform_indices = @transform_0, window_bounds = array<i64: 1, 128>}, {transform_indices = @transform_1, window_bounds = array<i64: 16, 128>}, {pipeline_mode = #tpu.pipeline_mode<synchronous>, transform_indices = @transform_2, window_bounds = array<i64: 1, 128>}, {pipeline_mode = #tpu.pipeline_mode<synchronous>, transform_indices = @transform_3, window_bounds = array<i64: 1, 128>}, {pipeline_mode = #tpu.pipeline_mode<synchronous>, transform_indices = @transform_4, window_bounds = array<i64: 128, 128>}, {pipeline_mode = #tpu.pipeline_mode<synchronous>, transform_indices = @transform_5, window_bounds = array<i64: 1, 128>}, {pipeline_mode = #tpu.pipeline_mode<synchronous>, transform_indices = @transform_6, window_bounds = array<i64: 128, 128>}, {pipeline_mode = #tpu.pipeline_mode<synchronous>, transform_indices = @transform_7, window_bounds = array<i64: 1, 128>}, {transform_indices = @transform_8, window_bounds = array<i64: 16, 128>}]} {
    %c0 = arith.constant 0 : index
    %c0_0 = arith.constant 0 : index
    %0 = vector.load %arg2[%c0, %c0_0] : memref<16x128xf32, #tpu.memory_space<vmem>>, vector<16x128xf32>
    %c0_1 = arith.constant 0 : index
    %c0_2 = arith.constant 0 : index
    %1 = vector.load %arg1[%c0_1, %c0_2] : memref<1x128xf32, #tpu.memory_space<vmem>>, vector<1x128xf32>
    %cst = arith.constant dense<0.000000e+00> : vector<16xf32>
    %2 = vector.multi_reduction <add>, %0, %cst [1] : vector<16x128xf32> to vector<16xf32>
    %3 = vector.shape_cast %2 : vector<16xf32> to vector<16x1xf32>
    %cst_3 = arith.constant 3.125000e-02 : f32
    %4 = vector.broadcast %cst_3 : f32 to vector<16x1xf32>
    %5 = arith.mulf %3, %4 : vector<16x1xf32>
    %6 = vector.broadcast %5 : vector<16x1xf32> to vector<16x128xf32>
    %7 = arith.subf %0, %6 : vector<16x128xf32>
    %8 = vector.broadcast %1 : vector<1x128xf32> to vector<16x128xf32>
    %9 = arith.mulf %7, %8 : vector<16x128xf32>
    %10 = arith.mulf %9, %9 : vector<16x128xf32>
    %cst_4 = arith.constant dense<0.000000e+00> : vector<16xf32>
    %11 = vector.multi_reduction <add>, %10, %cst_4 [1] : vector<16x128xf32> to vector<16xf32>
    %12 = vector.shape_cast %11 : vector<16xf32> to vector<16x1xf32>
    %cst_5 = arith.constant 3.125000e-02 : f32
    %13 = vector.broadcast %cst_5 : f32 to vector<16x1xf32>
    %14 = arith.mulf %12, %13 : vector<16x1xf32>
    %cst_6 = arith.constant 9.99999974E-6 : f32
    %15 = vector.broadcast %cst_6 : f32 to vector<16x1xf32>
    %16 = arith.addf %14, %15 : vector<16x1xf32>
    %17 = math.rsqrt %16 : vector<16x1xf32>
    %18 = vector.broadcast %17 : vector<16x1xf32> to vector<16x128xf32>
    %19 = arith.mulf %9, %18 : vector<16x128xf32>
    %c0_7 = arith.constant 0 : index
    %c0_8 = arith.constant 0 : index
    %20 = vector.load %arg3[%c0_7, %c0_8] : memref<1x128xf32, #tpu.memory_space<vmem>>, vector<1x128xf32>
    %21 = vector.broadcast %20 : vector<1x128xf32> to vector<16x128xf32>
    %22 = arith.mulf %19, %21 : vector<16x128xf32>
    %c0_9 = arith.constant 0 : index
    %c0_10 = arith.constant 0 : index
    %23 = vector.load %arg4[%c0_9, %c0_10] : memref<1x128xf32, #tpu.memory_space<vmem>>, vector<1x128xf32>
    %24 = vector.broadcast %23 : vector<1x128xf32> to vector<16x128xf32>
    %25 = arith.addf %22, %24 : vector<16x128xf32>
    %c0_11 = arith.constant 0 : index
    %c0_12 = arith.constant 0 : index
    %26 = vector.load %arg5[%c0_11, %c0_12] : memref<128x128xf32, #tpu.memory_space<vmem>>, vector<128x128xf32>
    %cst_13 = arith.constant dense<0.000000e+00> : vector<16x128xf32>
    %27 = tpu.matmul %25, %26, %cst_13 {dimension_numbers = #tpu.dot_dimension_numbers<[1], [0], [0], [1], [0, 0, 1, 1], [], []>} : vector<16x128xf32>, vector<128x128xf32>, vector<16x128xf32> -> vector<16x128xf32>
    %c0_14 = arith.constant 0 : index
    %c0_15 = arith.constant 0 : index
    %28 = vector.load %arg6[%c0_14, %c0_15] : memref<1x128xf32, #tpu.memory_space<vmem>>, vector<1x128xf32>
    %29 = vector.broadcast %28 : vector<1x128xf32> to vector<16x128xf32>
    %30 = arith.addf %27, %29 : vector<16x128xf32>
    %cst_16 = arith.constant 0.000000e+00 : f32
    %31 = vector.broadcast %cst_16 : f32 to vector<16x128xf32>
    %32 = arith.maximumf %30, %31 : vector<16x128xf32>
    %c0_17 = arith.constant 0 : index
    %c0_18 = arith.constant 0 : index
    %33 = vector.load %arg7[%c0_17, %c0_18] : memref<128x128xf32, #tpu.memory_space<vmem>>, vector<128x128xf32>
    %cst_19 = arith.constant dense<0.000000e+00> : vector<16x128xf32>
    %34 = tpu.matmul %32, %33, %cst_19 {dimension_numbers = #tpu.dot_dimension_numbers<[1], [0], [0], [1], [0, 0, 1, 1], [], []>} : vector<16x128xf32>, vector<128x128xf32>, vector<16x128xf32> -> vector<16x128xf32>
    %c0_20 = arith.constant 0 : index
    %c0_21 = arith.constant 0 : index
    %35 = vector.load %arg8[%c0_20, %c0_21] : memref<1x128xf32, #tpu.memory_space<vmem>>, vector<1x128xf32>
    %36 = vector.broadcast %35 : vector<1x128xf32> to vector<16x128xf32>
    %37 = arith.addf %34, %36 : vector<16x128xf32>
    %cst_22 = arith.constant 0.000000e+00 : f32
    %38 = vector.broadcast %cst_22 : f32 to vector<16x128xf32>
    %39 = arith.maximumf %37, %38 : vector<16x128xf32>
    %40 = arith.addf %0, %39 : vector<16x128xf32>
    %c0_23 = arith.constant 0 : index
    %c0_24 = arith.constant 0 : index
    %41 = vector.load %arg9[%c0_23, %c0_24] : memref<16x128xf32, #tpu.memory_space<vmem>>, vector<16x128xf32>
    tpu.vector_store %arg9[%c0_23, %c0_24], %40 {strides = array<i32>} : memref<16x128xf32, #tpu.memory_space<vmem>>, vector<16x128xf32>,
    return
  }
  func.func @transform_0(%arg0: i32) -> (i32, i32) {
    %c0_i32 = arith.constant 0 : i32
    %c0_i32_0 = arith.constant 0 : i32
    %c0_i32_1 = arith.constant 0 : i32
    return %c0_i32, %c0_i32_0 : i32, i32
  }
  func.func @transform_1(%arg0: i32) -> (i32, i32) {
    %c0_i32 = arith.constant 0 : i32
    %c0_i32_0 = arith.constant 0 : i32
    return %arg0, %c0_i32 : i32, i32
  }
  func.func @transform_2(%arg0: i32) -> (i32, i32) {
    %c0_i32 = arith.constant 0 : i32
    %c0_i32_0 = arith.constant 0 : i32
    %c0_i32_1 = arith.constant 0 : i32
    return %c0_i32, %c0_i32_0 : i32, i32
  }
  func.func @transform_3(%arg0: i32) -> (i32, i32) {
    %c0_i32 = arith.constant 0 : i32
    %c0_i32_0 = arith.constant 0 : i32
    %c0_i32_1 = arith.constant 0 : i32
    return %c0_i32, %c0_i32_0 : i32, i32
  }
  func.func @transform_4(%arg0: i32) -> (i32, i32) {
    %c0_i32 = arith.constant 0 : i32
    %c0_i32_0 = arith.constant 0 : i32
    %c0_i32_1 = arith.constant 0 : i32
    return %c0_i32, %c0_i32_0 : i32, i32
  }
  func.func @transform_5(%arg0: i32) -> (i32, i32) {
    %c0_i32 = arith.constant 0 : i32
    %c0_i32_0 = arith.constant 0 : i32
    %c0_i32_1 = arith.constant 0 : i32
    return %c0_i32, %c0_i32_0 : i32, i32
  }
  func.func @transform_6(%arg0: i32) -> (i32, i32) {
    %c0_i32 = arith.constant 0 : i32
    %c0_i32_0 = arith.constant 0 : i32
    %c0_i32_1 = arith.constant 0 : i32
    return %c0_i32, %c0_i32_0 : i32, i32
  }
  func.func @transform_7(%arg0: i32) -> (i32, i32) {
    %c0_i32 = arith.constant 0 : i32
    %c0_i32_0 = arith.constant 0 : i32
    %c0_i32_1 = arith.constant 0 : i32
    return %c0_i32, %c0_i32_0 : i32, i32
  }
  func.func @transform_8(%arg0: i32) -> (i32, i32) {
    %c0_i32 = arith.constant 0 : i32
    %c0_i32_0 = arith.constant 0 : i32
    return %arg0, %c0_i32 : i32, i32
  }
}

module attributes {stable_mosaic.version = 11 : i64} {
  func.func @_residual_block_kernel(%arg0: i32, %arg1: memref<1x128xf32, #tpu.memory_space<vmem>>, %arg2: memref<16x128xf32, #tpu.memory_space<vmem>>, %arg3: memref<1x128xf32, #tpu.memory_space<vmem>>, %arg4: memref<1x128xf32, #tpu.memory_space<vmem>>, %arg5: memref<128x128xf32, #tpu.memory_space<vmem>>, %arg6: memref<1x128xf32, #tpu.memory_space<vmem>>, %arg7: memref<128x128xf32, #tpu.memory_space<vmem>>, %arg8: memref<1x128xf32, #tpu.memory_space<vmem>>, %arg9: memref<16x128xf32, #tpu.memory_space<vmem>>) attributes {dimension_semantics = [#tpu.dimension_semantics<parallel>], iteration_bounds = array<i64: 1>, scalar_prefetch = 0 : i64, scratch_operands = 0 : i64, tpu.core_type = #tpu.core_type<tc>, window_params = [{pipeline_mode = #tpu.pipeline_mode<synchronous>, transform_indices = @transform_0, window_bounds = array<i64: 1, 128>}, {transform_indices = @transform_1, window_bounds = array<i64: 16, 128>}, {pipeline_mode = #tpu.pipeline_mode<synchronous>, transform_indices = @transform_2, window_bounds = array<i64: 1, 128>}, {pipeline_mode = #tpu.pipeline_mode<synchronous>, transform_indices = @transform_3, window_bounds = array<i64: 1, 128>}, {pipeline_mode = #tpu.pipeline_mode<synchronous>, transform_indices = @transform_4, window_bounds = array<i64: 128, 128>}, {pipeline_mode = #tpu.pipeline_mode<synchronous>, transform_indices = @transform_5, window_bounds = array<i64: 1, 128>}, {pipeline_mode = #tpu.pipeline_mode<synchronous>, transform_indices = @transform_6, window_bounds = array<i64: 128, 128>}, {pipeline_mode = #tpu.pipeline_mode<synchronous>, transform_indices = @transform_7, window_bounds = array<i64: 1, 128>}, {transform_indices = @transform_8, window_bounds = array<i64: 16, 128>}]} {
    %c0 = arith.constant 0 : index
    %c0_0 = arith.constant 0 : index
    %0 = vector.load %arg2[%c0, %c0_0] : memref<16x128xf32, #tpu.memory_space<vmem>>, vector<16x128xf32>
    %c0_1 = arith.constant 0 : index
    %c0_2 = arith.constant 0 : index
    %1 = vector.load %arg1[%c0_1, %c0_2] : memref<1x128xf32, #tpu.memory_space<vmem>>, vector<1x128xf32>
    %cst = arith.constant dense<0.000000e+00> : vector<16xf32>
    %2 = vector.multi_reduction <add>, %0, %cst [1] : vector<16x128xf32> to vector<16xf32>
    %3 = vector.shape_cast %2 : vector<16xf32> to vector<16x1xf32>
    %cst_3 = arith.constant 3.125000e-02 : f32
    %4 = vector.broadcast %cst_3 : f32 to vector<16x1xf32>
    %5 = arith.mulf %3, %4 : vector<16x1xf32>
    %6 = vector.broadcast %5 : vector<16x1xf32> to vector<16x128xf32>
    %7 = arith.subf %0, %6 : vector<16x128xf32>
    %8 = vector.broadcast %1 : vector<1x128xf32> to vector<16x128xf32>
    %9 = arith.mulf %7, %8 : vector<16x128xf32>
    %10 = arith.mulf %9, %9 : vector<16x128xf32>
    %cst_4 = arith.constant dense<0.000000e+00> : vector<16xf32>
    %11 = vector.multi_reduction <add>, %10, %cst_4 [1] : vector<16x128xf32> to vector<16xf32>
    %12 = vector.shape_cast %11 : vector<16xf32> to vector<16x1xf32>
    %cst_5 = arith.constant 3.125000e-02 : f32
    %13 = vector.broadcast %cst_5 : f32 to vector<16x1xf32>
    %14 = arith.mulf %12, %13 : vector<16x1xf32>
    %cst_6 = arith.constant 9.99999974E-6 : f32
    %15 = vector.broadcast %cst_6 : f32 to vector<16x1xf32>
    %16 = arith.addf %14, %15 : vector<16x1xf32>
    %17 = math.rsqrt %16 : vector<16x1xf32>
    %18 = vector.broadcast %17 : vector<16x1xf32> to vector<16x128xf32>
    %19 = arith.mulf %9, %18 : vector<16x128xf32>
    %c0_7 = arith.constant 0 : index
    %c0_8 = arith.constant 0 : index
    %20 = vector.load %arg3[%c0_7, %c0_8] : memref<1x128xf32, #tpu.memory_space<vmem>>, vector<1x128xf32>
    %21 = vector.broadcast %20 : vector<1x128xf32> to vector<16x128xf32>
    %22 = arith.mulf %19, %21 : vector<16x128xf32>
    %c0_9 = arith.constant 0 : index
    %c0_10 = arith.constant 0 : index
    %23 = vector.load %arg4[%c0_9, %c0_10] : memref<1x128xf32, #tpu.memory_space<vmem>>, vector<1x128xf32>
    %24 = vector.broadcast %23 : vector<1x128xf32> to vector<16x128xf32>
    %25 = arith.addf %22, %24 : vector<16x128xf32>
    %c0_11 = arith.constant 0 : index
    %c0_12 = arith.constant 0 : index
    %26 = vector.load %arg5[%c0_11, %c0_12] : memref<128x128xf32, #tpu.memory_space<vmem>>, vector<128x128xf32>
    %cst_13 = arith.constant dense<0.000000e+00> : vector<16x128xf32>
    %27 = tpu.matmul %25, %26, %cst_13 {dimension_numbers = #tpu.dot_dimension_numbers<[1], [0], [0], [1], [0, 0, 1, 1], [], []>} : vector<16x128xf32>, vector<128x128xf32>, vector<16x128xf32> -> vector<16x128xf32>
    %c0_14 = arith.constant 0 : index
    %c0_15 = arith.constant 0 : index
    %28 = vector.load %arg6[%c0_14, %c0_15] : memref<1x128xf32, #tpu.memory_space<vmem>>, vector<1x128xf32>
    %29 = vector.broadcast %28 : vector<1x128xf32> to vector<16x128xf32>
    %30 = arith.addf %27, %29 : vector<16x128xf32>
    %cst_16 = arith.constant 0.000000e+00 : f32
    %31 = vector.broadcast %cst_16 : f32 to vector<16x128xf32>
    %32 = arith.maximumf %30, %31 : vector<16x128xf32>
    %c0_17 = arith.constant 0 : index
    %c0_18 = arith.constant 0 : index
    %33 = vector.load %arg7[%c0_17, %c0_18] : memref<128x128xf32, #tpu.memory_space<vmem>>, vector<128x128xf32>
    %cst_19 = arith.constant dense<0.000000e+00> : vector<16x128xf32>
    %34 = tpu.matmul %32, %33, %cst_19 {dimension_numbers = #tpu.dot_dimension_numbers<[1], [0], [0], [1], [0, 0, 1, 1], [], []>} : vector<16x128xf32>, vector<128x128xf32>, vector<16x128xf32> -> vector<16x128xf32>
    %c0_20 = arith.constant 0 : index
    %c0_21 = arith.constant 0 : index
    %35 = vector.load %arg8[%c0_20, %c0_21] : memref<1x128xf32, #tpu.memory_space<vmem>>, vector<1x128xf32>
    %36 = vector.broadcast %35 : vector<1x128xf32> to vector<16x128xf32>
    %37 = arith.addf %34, %36 : vector<16x128xf32>
    %cst_22 = arith.constant 0.000000e+00 : f32
    %38 = vector.broadcast %cst_22 : f32 to vector<16x128xf32>
    %39 = arith.maximumf %37, %38 : vector<16x128xf32>
    %40 = arith.addf %0, %39 : vector<16x128xf32>
    %c0_23 = arith.constant 0 : index
    %c0_24 = arith.constant 0 : index
    %41 = vector.load %arg9[%c0_23, %c0_24] : memref<16x128xf32, #tpu.memory_space<vmem>>, vector<16x128xf32>
    tpu.vector_store %arg9[%c0_23, %c0_24], %40 {strides = array<i32>} : memref<16x128xf32, #tpu.memory_space<vmem>>, vector<16x128xf32>,
    return
  }
  func.func @transform_0(%arg0: i32) -> (i32, i32) {
    %c0_i32 = arith.constant 0 : i32
    %c0_i32_0 = arith.constant 0 : i32
    %c0_i32_1 = arith.constant 0 : i32
    return %c0_i32, %c0_i32_0 : i32, i32
  }
  func.func @transform_1(%arg0: i32) -> (i32, i32) {
    %c0_i32 = arith.constant 0 : i32
    %c0_i32_0 = arith.constant 0 : i32
    return %arg0, %c0_i32 : i32, i32
  }
  func.func @transform_2(%arg0: i32) -> (i32, i32) {
    %c0_i32 = arith.constant 0 : i32
    %c0_i32_0 = arith.constant 0 : i32
    %c0_i32_1 = arith.constant 0 : i32
    return %c0_i32, %c0_i32_0 : i32, i32
  }
  func.func @transform_3(%arg0: i32) -> (i32, i32) {
    %c0_i32 = arith.constant 0 : i32
    %c0_i32_0 = arith.constant 0 : i32
    %c0_i32_1 = arith.constant 0 : i32
    return %c0_i32, %c0_i32_0 : i32, i32
  }
  func.func @transform_4(%arg0: i32) -> (i32, i32) {
    %c0_i32 = arith.constant 0 : i32
    %c0_i32_0 = arith.constant 0 : i32
    %c0_i32_1 = arith.constant 0 : i32
    return %c0_i32, %c0_i32_0 : i32, i32
  }
  func.func @transform_5(%arg0: i32) -> (i32, i32) {
    %c0_i32 = arith.constant 0 : i32
    %c0_i32_0 = arith.constant 0 : i32
    %c0_i32_1 = arith.constant 0 : i32
    return %c0_i32, %c0_i32_0 : i32, i32
  }
  func.func @transform_6(%arg0: i32) -> (i32, i32) {
    %c0_i32 = arith.constant 0 : i32
    %c0_i32_0 = arith.constant 0 : i32
    %c0_i32_1 = arith.constant 0 : i32
    return %c0_i32, %c0_i32_0 : i32, i32
  }
  func.func @transform_7(%arg0: i32) -> (i32, i32) {
    %c0_i32 = arith.constant 0 : i32
    %c0_i32_0 = arith.constant 0 : i32
    %c0_i32_1 = arith.constant 0 : i32
    return %c0_i32, %c0_i32_0 : i32, i32
  }
  func.func @transform_8(%arg0: i32) -> (i32, i32) {
    %c0_i32 = arith.constant 0 : i32
    %c0_i32_0 = arith.constant 0 : i32
    return %arg0, %c0_i32 : i32, i32
  }
}

</mosaic_0001>

<llo_original>
// kernel: tpu_custom_call.1
$region0: #{tpu_custom_call.1}
  #allocation0 [shape = 'u32[]', space=smem, size = 0x4, offset = 0x4, fixed_abs, tag = 'smem constant byte address 0x4 - core index']
  #allocation1 [shape = 'u32[144,128]{1,0:T(1,128)}', space=vmem, size = 0x12000, scoped, tag = 'internal scratch']
  %s0 = inlined_call_operand.hbm [shape: f32[1,128], index: 0, kind: input, shape index: {}]
  %s1 = inlined_call_operand.hbm [shape: f32[16,128], index: 1, kind: input, shape index: {}]
  %s2 = inlined_call_operand.vmem [shape: f32[1,128], index: 2, kind: input, shape index: {}]
  %s3 = inlined_call_operand.vmem [shape: f32[1,128], index: 3, kind: input, shape index: {}]
  %s4 = inlined_call_operand.hbm [shape: f32[128,128], index: 4, kind: input, shape index: {}]
  %s5 = inlined_call_operand.vmem [shape: f32[1,128], index: 5, kind: input, shape index: {}]
  %s6 = inlined_call_operand.hbm [shape: f32[128,128], index: 6, kind: input, shape index: {}]
  %s7 = inlined_call_operand.vmem [shape: f32[1,128], index: 7, kind: input, shape index: {}]
  %s8 = inlined_call_operand.hbm [shape: f32[16,128], index: 8, kind: output, shape index: {}]
  %s9 = sld [smem:[#allocation0]]
  $region58: #{tpu_custom_call.1} parent=0
    _
  %s11 = ssub.s32 1, %s9
  %s12 = scalar_select 0, %s11, %s9
  $region1: #{tpu_custom_call.1} parent=0
    #allocation2 [shape = 'u8[512]{0}', space=vmem, size = 0x400, scoped, tag = 'input window, operand 0, single buffered']
    #allocation3 [shape = 's32[1]{0}', space=sflag, size = 0x4, scoped, tag = 'scoped memory for tpu_custom_call.1']
    #allocation4 [shape = 's32[1]{0}', space=sflag, size = 0x4, scoped, tag = 'scoped memory for tpu_custom_call.1']
    #allocation5 [shape = 'u8[8192]{0}', space=vmem, size = 0x2000, scoped, tag = 'input window, operand 1, single buffered']
    #allocation6 [shape = 's32[1]{0}', space=sflag, size = 0x4, scoped, tag = 'scoped memory for tpu_custom_call.1']
    #allocation7 [shape = 'u8[65536]{0}', space=vmem, size = 0x10000, scoped, tag = 'input window, operand 4, single buffered']
    #allocation8 [shape = 'u8[65536]{0}', space=vmem, size = 0x10000, scoped, tag = 'input window, operand 6, single buffered']
    #allocation9 [shape = 's32[1]{0}', space=sflag, size = 0x4, scoped, tag = 'scoped memory for tpu_custom_call.1']
    #allocation10 [shape = 'u8[8192]{0}', space=vmem, size = 0x2000, scoped, tag = 'output window, operand 0, single buffered']
    %13 = vsyncpa [#allocation3], 0
    %14 = vsyncpa [#allocation6], 0
    %15 = vsyncpa [#allocation9], 0
    %16 = vsyncpa [#allocation4], 0
    // Predicated region
    $region2: #{tpu_custom_call.1} parent=1 // pred_check
      _
    $region3: #{tpu_custom_call.1} parent=1 // pred_check_branch
      %18 = sbr.rel (0) target = $region5
    $region4: #{tpu_custom_call.1} parent=1 // pred_region
      %s20 = ssub.s32 16, 16
      %21 = vsyncadd [#allocation3], %s20
      %s23 = sshll.u32 [#allocation2], 4
      %s24 = int_to_ptr.vmem [resolvable:$true] %s23
      %26 = dma.hbm_to_vmem [thread:$0]  %s0, 16, %s24, [#allocation3]
    $region5: #{tpu_custom_call.1} parent=1 // pred_fallthru
      _
    // Predicated region
    $region6: #{tpu_custom_call.1} parent=1 // pred_check
      _
    $region7: #{tpu_custom_call.1} parent=1 // pred_check_branch
      %28 = sbr.rel (0) target = $region9
    $region8: #{tpu_custom_call.1} parent=1 // pred_region
      %s30 = ssub.s32 256, 256
      %31 = vsyncadd [#allocation6], %s30
      %s32 = sshll.u32 [#allocation5], 4
      %s33 = int_to_ptr.vmem [resolvable:$true] %s32
      %38 = dma.hbm_to_vmem [thread:$0]  %s1, 256, %s33, [#allocation6], 128, 128, 8
    $region9: #{tpu_custom_call.1} parent=1 // pred_fallthru
      _
    // Predicated region
    $region10: #{tpu_custom_call.1} parent=1 // pred_check
      _
    $region11: #{tpu_custom_call.1} parent=1 // pred_check_branch
      %40 = sbr.rel (0) target = $region13
    $region12: #{tpu_custom_call.1} parent=1 // pred_region
      _
    $region13: #{tpu_custom_call.1} parent=1 // pred_fallthru
      _
    // Predicated region
    $region14: #{tpu_custom_call.1} parent=1 // pred_check
      _
    $region15: #{tpu_custom_call.1} parent=1 // pred_check_branch
      %42 = sbr.rel (0) target = $region17
    $region16: #{tpu_custom_call.1} parent=1 // pred_region
      _
    $region17: #{tpu_custom_call.1} parent=1 // pred_fallthru
      _
    // Predicated region
    $region18: #{tpu_custom_call.1} parent=1 // pred_check
      _
    $region19: #{tpu_custom_call.1} parent=1 // pred_check_branch
      %44 = sbr.rel (0) target = $region21
    $region20: #{tpu_custom_call.1} parent=1 // pred_region
      %s46 = ssub.s32 2048, 2048
      %47 = vsyncadd [#allocation6], %s46
      %s48 = sshll.u32 [#allocation7], 4
      %s49 = int_to_ptr.vmem [resolvable:$true] %s48
      %54 = dma.hbm_to_vmem [thread:$0]  %s4, 2048, %s49, [#allocation6], 128, 128, 8
    $region21: #{tpu_custom_call.1} parent=1 // pred_fallthru
      _
    // Predicated region
    $region22: #{tpu_custom_call.1} parent=1 // pred_check
      _
    $region23: #{tpu_custom_call.1} parent=1 // pred_check_branch
      %56 = sbr.rel (0) target = $region25
    $region24: #{tpu_custom_call.1} parent=1 // pred_region
      _
    $region25: #{tpu_custom_call.1} parent=1 // pred_fallthru
      _
    // Predicated region
    $region26: #{tpu_custom_call.1} parent=1 // pred_check
      _
    $region27: #{tpu_custom_call.1} parent=1 // pred_check_branch
      %58 = sbr.rel (0) target = $region29
    $region28: #{tpu_custom_call.1} parent=1 // pred_region
      %s60 = ssub.s32 2048, 2048
      %61 = vsyncadd [#allocation9], %s60
      %s62 = sshll.u32 [#allocation8], 4
      %s63 = int_to_ptr.vmem [resolvable:$true] %s62
      %68 = dma.hbm_to_vmem [thread:$0]  %s6, 2048, %s63, [#allocation9], 128, 128, 8
    $region29: #{tpu_custom_call.1} parent=1 // pred_fallthru
      _
    // Predicated region
    $region30: #{tpu_custom_call.1} parent=1 // pred_check
      _
    $region31: #{tpu_custom_call.1} parent=1 // pred_check_branch
      %70 = sbr.rel (0) target = $region33
    $region32: #{tpu_custom_call.1} parent=1 // pred_region
      _
    $region33: #{tpu_custom_call.1} parent=1 // pred_fallthru
      _
    // Predicated region
    $region34: #{tpu_custom_call.1} parent=1 // pred_check
      _
    $region35: #{tpu_custom_call.1} parent=1 // pred_check_branch
      %72 = sbr.rel (0) target = $region37
    $region36: #{tpu_custom_call.1} parent=1 // pred_region
      %73 = dma.done [#allocation3], 16
    $region37: #{tpu_custom_call.1} parent=1 // pred_fallthru
      _
    // Predicated region
    $region38: #{tpu_custom_call.1} parent=1 // pred_check
      _
    $region39: #{tpu_custom_call.1} parent=1 // pred_check_branch
      %75 = sbr.rel (0) target = $region41
    $region40: #{tpu_custom_call.1} parent=1 // pred_region
      %76 = dma.done [#allocation6], 256
    $region41: #{tpu_custom_call.1} parent=1 // pred_fallthru
      _
    // Predicated region
    $region42: #{tpu_custom_call.1} parent=1 // pred_check
      _
    $region43: #{tpu_custom_call.1} parent=1 // pred_check_branch
      %78 = sbr.rel (0) target = $region45
    $region44: #{tpu_custom_call.1} parent=1 // pred_region
      %79 = dma.done [#allocation6], 2048
    $region45: #{tpu_custom_call.1} parent=1 // pred_fallthru
      _
    // Predicated region
    $region46: #{tpu_custom_call.1} parent=1 // pred_check
      _
    $region47: #{tpu_custom_call.1} parent=1 // pred_check_branch
      %81 = sbr.rel (0) target = $region49
    $region48: #{tpu_custom_call.1} parent=1 // pred_region
      %82 = dma.done [#allocation9], 2048
    $region49: #{tpu_custom_call.1} parent=1 // pred_fallthru
      _
    %v83 = vld [vmem:[#allocation5] sm:$0xff]
    %v84 = vld [vmem:[#allocation5 + $0x8] sm:$0xff]
    %v85 = vld [vmem:[#allocation2] sm:$0x1]
    %86 = vadd.xlane.f32.xlu0 %v83
    %v87 = vpop.xlane.xlu0 %86
    %88 = vadd.xlane.f32.xlu0 %v84
    %v89 = vpop.xlane.xlu0 %88
    %v90 = vmul.f32 %v87, 0.03125
    %v91 = vmul.f32 %v89, 0.03125
    %v92 = vsub.f32 %v83, %v90
    %v93 = vsub.f32 %v84, %v91
    %v95 = vlaneseq
    %v96 = vshrl.u32 %v95, 7
    %v97 = vsub.s32 0, %v96
    %v98 = vrot.slane %v85, %v97
    %v100 = vmul.f32 %v92, %v98
    %v101 = vmul.f32 %v93, %v98
    %v102 = vmul.f32 %v100, %v100
    %v103 = vmul.f32 %v101, %v101
    %104 = vadd.xlane.f32.xlu0 %v102
    %v105 = vpop.xlane.xlu0 %104
    %106 = vadd.xlane.f32.xlu0 %v103
    %v107 = vpop.xlane.xlu0 %106
    %v108 = vmul.f32 %v105, 0.03125
    %v109 = vmul.f32 %v107, 0.03125
    %v110 = vadd.f32 %v108, 1e-05
    %v111 = vadd.f32 %v109, 1e-05
    %v112 = vrsqrt.pop %v110
    %v113 = vrsqrt.pop %v111
    %v114 = vmul.f32 %v100, %v112
    %v115 = vmul.f32 %v101, %v113
    %v116 = vld [vmem:[%s2] sm:$0x1]
    %v118 = vlaneseq
    %v119 = vshrl.u32 %v118, 7
    %v120 = vsub.s32 0, %v119
    %v121 = vrot.slane %v116, %v120
    %v123 = vmul.f32 %v114, %v121
    %v124 = vmul.f32 %v115, %v121
    %v125 = vld [vmem:[%s3] sm:$0x1]
    %v127 = vlaneseq
    %v128 = vshrl.u32 %v127, 7
    %v129 = vsub.s32 0, %v128
    %v130 = vrot.slane %v125, %v129
    %v132 = vadd.f32 %v123, %v130
    %v133 = vadd.f32 %v124, %v130
    %v134 = vld [vmem:[#allocation7] sm:$0xff]
    %v135 = vld [vmem:[#allocation7 + $0x8] sm:$0xff]
    %v136 = vld [vmem:[#allocation7 + $0x10] sm:$0xff]
    %v137 = vld [vmem:[#allocation7 + $0x18] sm:$0xff]
    %v138 = vld [vmem:[#allocation7 + $0x20] sm:$0xff]
    %v139 = vld [vmem:[#allocation7 + $0x28] sm:$0xff]
    %v140 = vld [vmem:[#allocation7 + $0x30] sm:$0xff]
    %v141 = vld [vmem:[#allocation7 + $0x38] sm:$0xff]
    %v142 = vld [vmem:[#allocation7 + $0x40] sm:$0xff]
    %v143 = vld [vmem:[#allocation7 + $0x48] sm:$0xff]
    %v144 = vld [vmem:[#allocation7 + $0x50] sm:$0xff]
    %v145 = vld [vmem:[#allocation7 + $0x58] sm:$0xff]
    %v146 = vld [vmem:[#allocation7 + $0x60] sm:$0xff]
    %v147 = vld [vmem:[#allocation7 + $0x68] sm:$0xff]
    %v148 = vld [vmem:[#allocation7 + $0x70] sm:$0xff]
    %v149 = vld [vmem:[#allocation7 + $0x78] sm:$0xff]
    %v150 = vld [vmem:[%s5] sm:$0x1]
    %v152 = vlaneseq
    %v153 = vshrl.u32 %v152, 7
    %v154 = vsub.s32 0, %v153
    %v155 = vrot.slane %v150, %v154
    %157 = vmatprep.subr.mxu0 0.0
    %158 = vmatpush1.msra.mxu0 %v134
    %159 = vmatprep.subr.mxu0 0.0
    %160 = vmatpush1.msra.mxu0 %v135
    %161 = vmatprep.subr.mxu0 0.0
    %162 = vmatpush1.msra.mxu0 %v136
    %163 = vmatprep.subr.mxu0 0.0
    %164 = vmatpush1.msra.mxu0 %v137
    %165 = vmatprep.subr.mxu0 0.0
    %166 = vmatpush1.msra.mxu0 %v138
    %167 = vmatprep.subr.mxu0 0.0
    %168 = vmatpush1.msra.mxu0 %v139
    %169 = vmatprep.subr.mxu0 0.0
    %170 = vmatpush1.msra.mxu0 %v140
    %171 = vmatprep.subr.mxu0 0.0
    %172 = vmatpush1.msra.mxu0 %v141
    %173 = vmatprep.subr.mxu0 0.0
    %174 = vmatpush1.msra.mxu0 %v142
    %175 = vmatprep.subr.mxu0 0.0
    %176 = vmatpush1.msra.mxu0 %v143
    %177 = vmatprep.subr.mxu0 0.0
    %178 = vmatpush1.msra.mxu0 %v144
    %179 = vmatprep.subr.mxu0 0.0
    %180 = vmatpush1.msra.mxu0 %v145
    %181 = vmatprep.subr.mxu0 0.0
    %182 = vmatpush1.msra.mxu0 %v146
    %183 = vmatprep.subr.mxu0 0.0
    %184 = vmatpush1.msra.mxu0 %v147
    %185 = vmatprep.subr.mxu0 0.0
    %186 = vmatpush1.msra.mxu0 %v148
    %187 = vmatprep.subr.mxu0 0.0
    %188 = vmatpush1.msra.mxu0 %v149
    %189 = vmatprep.subr.mxu0 0.0
    %190 = vmatpush1.msra.mxu0 0.0
    %191 = vmatprep.subr.mxu0 0.0
    %192 = vmatpush1.msra.mxu0 0.0
    %193 = vmatprep.subr.mxu0 0.0
    %194 = vmatpush1.msra.mxu0 0.0
    %195 = vmatprep.subr.mxu0 0.0
    %196 = vmatpush1.msra.mxu0 0.0
    %197 = vmatprep.subr.mxu0 0.0
    %198 = vmatpush1.msra.mxu0 0.0
    %199 = vmatprep.subr.mxu0 0.0
    %200 = vmatpush1.msra.mxu0 0.0
    %201 = vmatprep.subr.mxu0 0.0
    %202 = vmatpush1.msra.mxu0 0.0
    %203 = vmatprep.subr.mxu0 0.0
    %204 = vmatpush1.msra.mxu0 0.0
    %205 = vmatprep.subr.mxu0 0.0
    %206 = vmatpush1.msra.mxu0 0.0
    %207 = vmatprep.subr.mxu0 0.0
    %208 = vmatpush1.msra.mxu0 0.0
    %209 = vmatprep.subr.mxu0 0.0
    %210 = vmatpush1.msra.mxu0 0.0
    %211 = vmatprep.subr.mxu0 0.0
    %212 = vmatpush1.msra.mxu0 0.0
    %213 = vmatprep.subr.mxu0 0.0
    %214 = vmatpush1.msra.mxu0 0.0
    %215 = vmatprep.subr.mxu0 0.0
    %216 = vmatpush1.msra.mxu0 0.0
    %217 = vmatprep.subr.mxu0 0.0
    %218 = vmatpush1.msra.mxu0 0.0
    %219 = vmatprep.subr.mxu0 0.0
    %220 = vmatpush1.msra.mxu0 0.0
    %221 = vmatprep.mubr.f32.mxu0 0.0
    %222 = vmatmul.mubr.f32.gmra.mrb[0].mxu0 %v132
    %v223 = vpop.f32.mrb[0].mxu0
    %v224 = vadd.f32 %v155, %v223
    %v225 = vpop.f32.mrb[0].mxu0
    %226 = vmatprep.mubr.f32.mxu0 0.0
    %227 = vmatmul.mubr.f32.gmra.mrb[0].mxu0 %v133
    %v228 = vpop.f32.mrb[0].mxu0
    %v229 = vadd.f32 %v155, %v228
    %v230 = vpop.f32.mrb[0].mxu0
    %231 = vdwg.mxu0
    %v232 = vmax.f32 %v224, 0.0
    %v233 = vmax.f32 %v229, 0.0
    %v234 = vld [vmem:[#allocation8] sm:$0xff]
    %v235 = vld [vmem:[#allocation8 + $0x8] sm:$0xff]
    %v236 = vld [vmem:[#allocation8 + $0x10] sm:$0xff]
    %v237 = vld [vmem:[#allocation8 + $0x18] sm:$0xff]
    %v238 = vld [vmem:[#allocation8 + $0x20] sm:$0xff]
    %v239 = vld [vmem:[#allocation8 + $0x28] sm:$0xff]
    %v240 = vld [vmem:[#allocation8 + $0x30] sm:$0xff]
    %v241 = vld [vmem:[#allocation8 + $0x38] sm:$0xff]
    %v242 = vld [vmem:[#allocation8 + $0x40] sm:$0xff]
    %v243 = vld [vmem:[#allocation8 + $0x48] sm:$0xff]
    %v244 = vld [vmem:[#allocation8 + $0x50] sm:$0xff]
    %v245 = vld [vmem:[#allocation8 + $0x58] sm:$0xff]
    %v246 = vld [vmem:[#allocation8 + $0x60] sm:$0xff]
    %v247 = vld [vmem:[#allocation8 + $0x68] sm:$0xff]
    %v248 = vld [vmem:[#allocation8 + $0x70] sm:$0xff]
    %v249 = vld [vmem:[#allocation8 + $0x78] sm:$0xff]
    %v250 = vld [vmem:[%s7] sm:$0x1]
    %v252 = vlaneseq
    %v253 = vshrl.u32 %v252, 7
    %v254 = vsub.s32 0, %v253
    %v255 = vrot.slane %v250, %v254
    %257 = vmatprep.subr.mxu0 0.0
    %258 = vmatpush1.msra.mxu0 %v234
    %259 = vmatprep.subr.mxu0 0.0
    %260 = vmatpush1.msra.mxu0 %v235
    %261 = vmatprep.subr.mxu0 0.0
    %262 = vmatpush1.msra.mxu0 %v236
    %263 = vmatprep.subr.mxu0 0.0
    %264 = vmatpush1.msra.mxu0 %v237
    %265 = vmatprep.subr.mxu0 0.0
    %266 = vmatpush1.msra.mxu0 %v238
    %267 = vmatprep.subr.mxu0 0.0
    %268 = vmatpush1.msra.mxu0 %v239
    %269 = vmatprep.subr.mxu0 0.0
    %270 = vmatpush1.msra.mxu0 %v240
    %271 = vmatprep.subr.mxu0 0.0
    %272 = vmatpush1.msra.mxu0 %v241
    %273 = vmatprep.subr.mxu0 0.0
    %274 = vmatpush1.msra.mxu0 %v242
    %275 = vmatprep.subr.mxu0 0.0
    %276 = vmatpush1.msra.mxu0 %v243
    %277 = vmatprep.subr.mxu0 0.0
    %278 = vmatpush1.msra.mxu0 %v244
    %279 = vmatprep.subr.mxu0 0.0
    %280 = vmatpush1.msra.mxu0 %v245
    %281 = vmatprep.subr.mxu0 0.0
    %282 = vmatpush1.msra.mxu0 %v246
    %283 = vmatprep.subr.mxu0 0.0
    %284 = vmatpush1.msra.mxu0 %v247
    %285 = vmatprep.subr.mxu0 0.0
    %286 = vmatpush1.msra.mxu0 %v248
    %287 = vmatprep.subr.mxu0 0.0
    %288 = vmatpush1.msra.mxu0 %v249
    %289 = vmatprep.subr.mxu0 0.0
    %290 = vmatpush1.msra.mxu0 0.0
    %291 = vmatprep.subr.mxu0 0.0
    %292 = vmatpush1.msra.mxu0 0.0
    %293 = vmatprep.subr.mxu0 0.0
    %294 = vmatpush1.msra.mxu0 0.0
    %295 = vmatprep.subr.mxu0 0.0
    %296 = vmatpush1.msra.mxu0 0.0
    %297 = vmatprep.subr.mxu0 0.0
    %298 = vmatpush1.msra.mxu0 0.0
    %299 = vmatprep.subr.mxu0 0.0
    %300 = vmatpush1.msra.mxu0 0.0
    %301 = vmatprep.subr.mxu0 0.0
    %302 = vmatpush1.msra.mxu0 0.0
    %303 = vmatprep.subr.mxu0 0.0
    %304 = vmatpush1.msra.mxu0 0.0
    %305 = vmatprep.subr.mxu0 0.0
    %306 = vmatpush1.msra.mxu0 0.0
    %307 = vmatprep.subr.mxu0 0.0
    %308 = vmatpush1.msra.mxu0 0.0
    %309 = vmatprep.subr.mxu0 0.0
    %310 = vmatpush1.msra.mxu0 0.0
    %311 = vmatprep.subr.mxu0 0.0
    %312 = vmatpush1.msra.mxu0 0.0
    %313 = vmatprep.subr.mxu0 0.0
    %314 = vmatpush1.msra.mxu0 0.0
    %315 = vmatprep.subr.mxu0 0.0
    %316 = vmatpush1.msra.mxu0 0.0
    %317 = vmatprep.subr.mxu0 0.0
    %318 = vmatpush1.msra.mxu0 0.0
    %319 = vmatprep.subr.mxu0 0.0
    %320 = vmatpush1.msra.mxu0 0.0
    %321 = vmatprep.mubr.f32.mxu0 0.0
    %322 = vmatmul.mubr.f32.gmra.mrb[0].mxu0 %v232
    %v323 = vpop.f32.mrb[0].mxu0
    %v324 = vadd.f32 %v255, %v323
    %v325 = vpop.f32.mrb[0].mxu0
    %326 = vmatprep.mubr.f32.mxu0 0.0
    %327 = vmatmul.mubr.f32.gmra.mrb[0].mxu0 %v233
    %v328 = vpop.f32.mrb[0].mxu0
    %v329 = vadd.f32 %v255, %v328
    %v330 = vpop.f32.mrb[0].mxu0
    %331 = vdwg.mxu0
    %v332 = vmax.f32 %v324, 0.0
    %v333 = vmax.f32 %v329, 0.0
    %v334 = vadd.f32 %v83, %v332
    %v335 = vadd.f32 %v84, %v333
    %336 = vst [vmem:[#allocation10] sm:$0xff] %v334
    %337 = vst [vmem:[#allocation10 + $0x8] sm:$0xff] %v335
    // Predicated region
    $region50: #{tpu_custom_call.1} parent=1 // pred_check
      _
    $region51: #{tpu_custom_call.1} parent=1 // pred_check_branch
      %339 = sbr.rel (0) target = $region53
    $region52: #{tpu_custom_call.1} parent=1 // pred_region
      %s341 = ssub.s32 256, 256
      %342 = vsyncadd [#allocation4], %s341
      %s343 = sshll.u32 [#allocation10], 4
      %s344 = int_to_ptr.vmem [resolvable:$true] %s343
      %349 = dma.vmem_to_hbm [thread:$0]  %s344, 256, %s8, [#allocation4], 128, 128, 8
    $region53: #{tpu_custom_call.1} parent=1 // pred_fallthru
      _
    // Predicated region
    $region54: #{tpu_custom_call.1} parent=1 // pred_check
      _
    $region55: #{tpu_custom_call.1} parent=1 // pred_check_branch
      %351 = sbr.rel (0) target = $region57
    $region56: #{tpu_custom_call.1} parent=1 // pred_region
      %352 = dma.done [#allocation4], 256
    $region57: #{tpu_custom_call.1} parent=1 // pred_fallthru
      _
    %353 = vsyncpa [#allocation3], 1
    %354 = vsyncpa [#allocation6], 1
    %355 = vsyncpa [#allocation9], 1
    %356 = vsyncpa [#allocation4], 1

// kernel: tpu_custom_call.1
$region0: #{tpu_custom_call.1}
  #allocation0 [shape = 'u32[]', space=smem, size = 0x4, offset = 0x4, fixed_abs, tag = 'smem constant byte address 0x4 - core index']
  #allocation1 [shape = 'u32[144,128]{1,0:T(1,128)}', space=vmem, size = 0x12000, scoped, tag = 'internal scratch']
  %s0 = inlined_call_operand.hbm [shape: f32[1,128], index: 0, kind: input, shape index: {}]
  %s1 = inlined_call_operand.hbm [shape: f32[16,128], index: 1, kind: input, shape index: {}]
  %s2 = inlined_call_operand.vmem [shape: f32[1,128], index: 2, kind: input, shape index: {}]
  %s3 = inlined_call_operand.vmem [shape: f32[1,128], index: 3, kind: input, shape index: {}]
  %s4 = inlined_call_operand.hbm [shape: f32[128,128], index: 4, kind: input, shape index: {}]
  %s5 = inlined_call_operand.vmem [shape: f32[1,128], index: 5, kind: input, shape index: {}]
  %s6 = inlined_call_operand.hbm [shape: f32[128,128], index: 6, kind: input, shape index: {}]
  %s7 = inlined_call_operand.vmem [shape: f32[1,128], index: 7, kind: input, shape index: {}]
  %s8 = inlined_call_operand.hbm [shape: f32[16,128], index: 8, kind: output, shape index: {}]
  %s9 = sld [smem:[#allocation0]]
  $region58: #{tpu_custom_call.1} parent=0
    _
  %s11 = ssub.s32 1, %s9
  %s12 = scalar_select 0, %s11, %s9
  $region1: #{tpu_custom_call.1} parent=0
    #allocation2 [shape = 'u8[512]{0}', space=vmem, size = 0x400, scoped, tag = 'input window, operand 0, single buffered']
    #allocation3 [shape = 's32[1]{0}', space=sflag, size = 0x4, scoped, tag = 'scoped memory for tpu_custom_call.1']
    #allocation4 [shape = 's32[1]{0}', space=sflag, size = 0x4, scoped, tag = 'scoped memory for tpu_custom_call.1']
    #allocation5 [shape = 'u8[8192]{0}', space=vmem, size = 0x2000, scoped, tag = 'input window, operand 1, single buffered']
    #allocation6 [shape = 's32[1]{0}', space=sflag, size = 0x4, scoped, tag = 'scoped memory for tpu_custom_call.1']
    #allocation7 [shape = 'u8[65536]{0}', space=vmem, size = 0x10000, scoped, tag = 'input window, operand 4, single buffered']
    #allocation8 [shape = 'u8[65536]{0}', space=vmem, size = 0x10000, scoped, tag = 'input window, operand 6, single buffered']
    #allocation9 [shape = 's32[1]{0}', space=sflag, size = 0x4, scoped, tag = 'scoped memory for tpu_custom_call.1']
    #allocation10 [shape = 'u8[8192]{0}', space=vmem, size = 0x2000, scoped, tag = 'output window, operand 0, single buffered']
    %13 = vsyncpa [#allocation3], 0
    %14 = vsyncpa [#allocation6], 0
    %15 = vsyncpa [#allocation9], 0
    %16 = vsyncpa [#allocation4], 0
    // Predicated region
    $region2: #{tpu_custom_call.1} parent=1 // pred_check
      _
    $region3: #{tpu_custom_call.1} parent=1 // pred_check_branch
      %18 = sbr.rel (0) target = $region5
    $region4: #{tpu_custom_call.1} parent=1 // pred_region
      %s20 = ssub.s32 16, 16
      %21 = vsyncadd [#allocation3], %s20
      %s23 = sshll.u32 [#allocation2], 4
      %s24 = int_to_ptr.vmem [resolvable:$true] %s23
      %26 = dma.hbm_to_vmem [thread:$0]  %s0, 16, %s24, [#allocation3]
    $region5: #{tpu_custom_call.1} parent=1 // pred_fallthru
      _
    // Predicated region
    $region6: #{tpu_custom_call.1} parent=1 // pred_check
      _
    $region7: #{tpu_custom_call.1} parent=1 // pred_check_branch
      %28 = sbr.rel (0) target = $region9
    $region8: #{tpu_custom_call.1} parent=1 // pred_region
      %s30 = ssub.s32 256, 256
      %31 = vsyncadd [#allocation6], %s30
      %s32 = sshll.u32 [#allocation5], 4
      %s33 = int_to_ptr.vmem [resolvable:$true] %s32
      %38 = dma.hbm_to_vmem [thread:$0]  %s1, 256, %s33, [#allocation6], 128, 128, 8
    $region9: #{tpu_custom_call.1} parent=1 // pred_fallthru
      _
    // Predicated region
    $region10: #{tpu_custom_call.1} parent=1 // pred_check
      _
    $region11: #{tpu_custom_call.1} parent=1 // pred_check_branch
      %40 = sbr.rel (0) target = $region13
    $region12: #{tpu_custom_call.1} parent=1 // pred_region
      _
    $region13: #{tpu_custom_call.1} parent=1 // pred_fallthru
      _
    // Predicated region
    $region14: #{tpu_custom_call.1} parent=1 // pred_check
      _
    $region15: #{tpu_custom_call.1} parent=1 // pred_check_branch
      %42 = sbr.rel (0) target = $region17
    $region16: #{tpu_custom_call.1} parent=1 // pred_region
      _
    $region17: #{tpu_custom_call.1} parent=1 // pred_fallthru
      _
    // Predicated region
    $region18: #{tpu_custom_call.1} parent=1 // pred_check
      _
    $region19: #{tpu_custom_call.1} parent=1 // pred_check_branch
      %44 = sbr.rel (0) target = $region21
    $region20: #{tpu_custom_call.1} parent=1 // pred_region
      %s46 = ssub.s32 2048, 2048
      %47 = vsyncadd [#allocation6], %s46
      %s48 = sshll.u32 [#allocation7], 4
      %s49 = int_to_ptr.vmem [resolvable:$true] %s48
      %54 = dma.hbm_to_vmem [thread:$0]  %s4, 2048, %s49, [#allocation6], 128, 128, 8
    $region21: #{tpu_custom_call.1} parent=1 // pred_fallthru
      _
    // Predicated region
    $region22: #{tpu_custom_call.1} parent=1 // pred_check
      _
    $region23: #{tpu_custom_call.1} parent=1 // pred_check_branch
      %56 = sbr.rel (0) target = $region25
    $region24: #{tpu_custom_call.1} parent=1 // pred_region
      _
    $region25: #{tpu_custom_call.1} parent=1 // pred_fallthru
      _
    // Predicated region
    $region26: #{tpu_custom_call.1} parent=1 // pred_check
      _
    $region27: #{tpu_custom_call.1} parent=1 // pred_check_branch
      %58 = sbr.rel (0) target = $region29
    $region28: #{tpu_custom_call.1} parent=1 // pred_region
      %s60 = ssub.s32 2048, 2048
      %61 = vsyncadd [#allocation9], %s60
      %s62 = sshll.u32 [#allocation8], 4
      %s63 = int_to_ptr.vmem [resolvable:$true] %s62
      %68 = dma.hbm_to_vmem [thread:$0]  %s6, 2048, %s63, [#allocation9], 128, 128, 8
    $region29: #{tpu_custom_call.1} parent=1 // pred_fallthru
      _
    // Predicated region
    $region30: #{tpu_custom_call.1} parent=1 // pred_check
      _
    $region31: #{tpu_custom_call.1} parent=1 // pred_check_branch
      %70 = sbr.rel (0) target = $region33
    $region32: #{tpu_custom_call.1} parent=1 // pred_region
      _
    $region33: #{tpu_custom_call.1} parent=1 // pred_fallthru
      _
    // Predicated region
    $region34: #{tpu_custom_call.1} parent=1 // pred_check
      _
    $region35: #{tpu_custom_call.1} parent=1 // pred_check_branch
      %72 = sbr.rel (0) target = $region37
    $region36: #{tpu_custom_call.1} parent=1 // pred_region
      %73 = dma.done [#allocation3], 16
    $region37: #{tpu_custom_call.1} parent=1 // pred_fallthru
      _
    // Predicated region
    $region38: #{tpu_custom_call.1} parent=1 // pred_check
      _
    $region39: #{tpu_custom_call.1} parent=1 // pred_check_branch
      %75 = sbr.rel (0) target = $region41
    $region40: #{tpu_custom_call.1} parent=1 // pred_region
      %76 = dma.done [#allocation6], 256
    $region41: #{tpu_custom_call.1} parent=1 // pred_fallthru
      _
    // Predicated region
    $region42: #{tpu_custom_call.1} parent=1 // pred_check
      _
    $region43: #{tpu_custom_call.1} parent=1 // pred_check_branch
      %78 = sbr.rel (0) target = $region45
    $region44: #{tpu_custom_call.1} parent=1 // pred_region
      %79 = dma.done [#allocation6], 2048
    $region45: #{tpu_custom_call.1} parent=1 // pred_fallthru
      _
    // Predicated region
    $region46: #{tpu_custom_call.1} parent=1 // pred_check
      _
    $region47: #{tpu_custom_call.1} parent=1 // pred_check_branch
      %81 = sbr.rel (0) target = $region49
    $region48: #{tpu_custom_call.1} parent=1 // pred_region
      %82 = dma.done [#allocation9], 2048
    $region49: #{tpu_custom_call.1} parent=1 // pred_fallthru
      _
    %v83 = vld [vmem:[#allocation5] sm:$0xff]
    %v84 = vld [vmem:[#allocation5 + $0x8] sm:$0xff]
    %v85 = vld [vmem:[#allocation2] sm:$0x1]
    %86 = vadd.xlane.f32.xlu0 %v83
    %v87 = vpop.xlane.xlu0 %86
    %88 = vadd.xlane.f32.xlu0 %v84
    %v89 = vpop.xlane.xlu0 %88
    %v90 = vmul.f32 %v87, 0.03125
    %v91 = vmul.f32 %v89, 0.03125
    %v92 = vsub.f32 %v83, %v90
    %v93 = vsub.f32 %v84, %v91
    %v95 = vlaneseq
    %v96 = vshrl.u32 %v95, 7
    %v97 = vsub.s32 0, %v96
    %v98 = vrot.slane %v85, %v97
    %v100 = vmul.f32 %v92, %v98
    %v101 = vmul.f32 %v93, %v98
    %v102 = vmul.f32 %v100, %v100
    %v103 = vmul.f32 %v101, %v101
    %104 = vadd.xlane.f32.xlu0 %v102
    %v105 = vpop.xlane.xlu0 %104
    %106 = vadd.xlane.f32.xlu0 %v103
    %v107 = vpop.xlane.xlu0 %106
    %v108 = vmul.f32 %v105, 0.03125
    %v109 = vmul.f32 %v107, 0.03125
    %v110 = vadd.f32 %v108, 1e-05
    %v111 = vadd.f32 %v109, 1e-05
    %v112 = vrsqrt.pop %v110
    %v113 = vrsqrt.pop %v111
    %v114 = vmul.f32 %v100, %v112
    %v115 = vmul.f32 %v101, %v113
    %v116 = vld [vmem:[%s2] sm:$0x1]
    %v118 = vlaneseq
    %v119 = vshrl.u32 %v118, 7
    %v120 = vsub.s32 0, %v119
    %v121 = vrot.slane %v116, %v120
    %v123 = vmul.f32 %v114, %v121
    %v124 = vmul.f32 %v115, %v121
    %v125 = vld [vmem:[%s3] sm:$0x1]
    %v127 = vlaneseq
    %v128 = vshrl.u32 %v127, 7
    %v129 = vsub.s32 0, %v128
    %v130 = vrot.slane %v125, %v129
    %v132 = vadd.f32 %v123, %v130
    %v133 = vadd.f32 %v124, %v130
    %v134 = vld [vmem:[#allocation7] sm:$0xff]
    %v135 = vld [vmem:[#allocation7 + $0x8] sm:$0xff]
    %v136 = vld [vmem:[#allocation7 + $0x10] sm:$0xff]
    %v137 = vld [vmem:[#allocation7 + $0x18] sm:$0xff]
    %v138 = vld [vmem:[#allocation7 + $0x20] sm:$0xff]
    %v139 = vld [vmem:[#allocation7 + $0x28] sm:$0xff]
    %v140 = vld [vmem:[#allocation7 + $0x30] sm:$0xff]
    %v141 = vld [vmem:[#allocation7 + $0x38] sm:$0xff]
    %v142 = vld [vmem:[#allocation7 + $0x40] sm:$0xff]
    %v143 = vld [vmem:[#allocation7 + $0x48] sm:$0xff]
    %v144 = vld [vmem:[#allocation7 + $0x50] sm:$0xff]
    %v145 = vld [vmem:[#allocation7 + $0x58] sm:$0xff]
    %v146 = vld [vmem:[#allocation7 + $0x60] sm:$0xff]
    %v147 = vld [vmem:[#allocation7 + $0x68] sm:$0xff]
    %v148 = vld [vmem:[#allocation7 + $0x70] sm:$0xff]
    %v149 = vld [vmem:[#allocation7 + $0x78] sm:$0xff]
    %v150 = vld [vmem:[%s5] sm:$0x1]
    %v152 = vlaneseq
    %v153 = vshrl.u32 %v152, 7
    %v154 = vsub.s32 0, %v153
    %v155 = vrot.slane %v150, %v154
    %157 = vmatprep.subr.mxu0 0.0
    %158 = vmatpush1.msra.mxu0 %v134
    %159 = vmatprep.subr.mxu0 0.0
    %160 = vmatpush1.msra.mxu0 %v135
    %161 = vmatprep.subr.mxu0 0.0
    %162 = vmatpush1.msra.mxu0 %v136
    %163 = vmatprep.subr.mxu0 0.0
    %164 = vmatpush1.msra.mxu0 %v137
    %165 = vmatprep.subr.mxu0 0.0
    %166 = vmatpush1.msra.mxu0 %v138
    %167 = vmatprep.subr.mxu0 0.0
    %168 = vmatpush1.msra.mxu0 %v139
    %169 = vmatprep.subr.mxu0 0.0
    %170 = vmatpush1.msra.mxu0 %v140
    %171 = vmatprep.subr.mxu0 0.0
    %172 = vmatpush1.msra.mxu0 %v141
    %173 = vmatprep.subr.mxu0 0.0
    %174 = vmatpush1.msra.mxu0 %v142
    %175 = vmatprep.subr.mxu0 0.0
    %176 = vmatpush1.msra.mxu0 %v143
    %177 = vmatprep.subr.mxu0 0.0
    %178 = vmatpush1.msra.mxu0 %v144
    %179 = vmatprep.subr.mxu0 0.0
    %180 = vmatpush1.msra.mxu0 %v145
    %181 = vmatprep.subr.mxu0 0.0
    %182 = vmatpush1.msra.mxu0 %v146
    %183 = vmatprep.subr.mxu0 0.0
    %184 = vmatpush1.msra.mxu0 %v147
    %185 = vmatprep.subr.mxu0 0.0
    %186 = vmatpush1.msra.mxu0 %v148
    %187 = vmatprep.subr.mxu0 0.0
    %188 = vmatpush1.msra.mxu0 %v149
    %189 = vmatprep.subr.mxu0 0.0
    %190 = vmatpush1.msra.mxu0 0.0
    %191 = vmatprep.subr.mxu0 0.0
    %192 = vmatpush1.msra.mxu0 0.0
    %193 = vmatprep.subr.mxu0 0.0
    %194 = vmatpush1.msra.mxu0 0.0
    %195 = vmatprep.subr.mxu0 0.0
    %196 = vmatpush1.msra.mxu0 0.0
    %197 = vmatprep.subr.mxu0 0.0
    %198 = vmatpush1.msra.mxu0 0.0
    %199 = vmatprep.subr.mxu0 0.0
    %200 = vmatpush1.msra.mxu0 0.0
    %201 = vmatprep.subr.mxu0 0.0
    %202 = vmatpush1.msra.mxu0 0.0
    %203 = vmatprep.subr.mxu0 0.0
    %204 = vmatpush1.msra.mxu0 0.0
    %205 = vmatprep.subr.mxu0 0.0
    %206 = vmatpush1.msra.mxu0 0.0
    %207 = vmatprep.subr.mxu0 0.0
    %208 = vmatpush1.msra.mxu0 0.0
    %209 = vmatprep.subr.mxu0 0.0
    %210 = vmatpush1.msra.mxu0 0.0
    %211 = vmatprep.subr.mxu0 0.0
    %212 = vmatpush1.msra.mxu0 0.0
    %213 = vmatprep.subr.mxu0 0.0
    %214 = vmatpush1.msra.mxu0 0.0
    %215 = vmatprep.subr.mxu0 0.0
    %216 = vmatpush1.msra.mxu0 0.0
    %217 = vmatprep.subr.mxu0 0.0
    %218 = vmatpush1.msra.mxu0 0.0
    %219 = vmatprep.subr.mxu0 0.0
    %220 = vmatpush1.msra.mxu0 0.0
    %221 = vmatprep.mubr.f32.mxu0 0.0
    %222 = vmatmul.mubr.f32.gmra.mrb[0].mxu0 %v132
    %v223 = vpop.f32.mrb[0].mxu0
    %v224 = vadd.f32 %v155, %v223
    %v225 = vpop.f32.mrb[0].mxu0
    %226 = vmatprep.mubr.f32.mxu0 0.0
    %227 = vmatmul.mubr.f32.gmra.mrb[0].mxu0 %v133
    %v228 = vpop.f32.mrb[0].mxu0
    %v229 = vadd.f32 %v155, %v228
    %v230 = vpop.f32.mrb[0].mxu0
    %231 = vdwg.mxu0
    %v232 = vmax.f32 %v224, 0.0
    %v233 = vmax.f32 %v229, 0.0
    %v234 = vld [vmem:[#allocation8] sm:$0xff]
    %v235 = vld [vmem:[#allocation8 + $0x8] sm:$0xff]
    %v236 = vld [vmem:[#allocation8 + $0x10] sm:$0xff]
    %v237 = vld [vmem:[#allocation8 + $0x18] sm:$0xff]
    %v238 = vld [vmem:[#allocation8 + $0x20] sm:$0xff]
    %v239 = vld [vmem:[#allocation8 + $0x28] sm:$0xff]
    %v240 = vld [vmem:[#allocation8 + $0x30] sm:$0xff]
    %v241 = vld [vmem:[#allocation8 + $0x38] sm:$0xff]
    %v242 = vld [vmem:[#allocation8 + $0x40] sm:$0xff]
    %v243 = vld [vmem:[#allocation8 + $0x48] sm:$0xff]
    %v244 = vld [vmem:[#allocation8 + $0x50] sm:$0xff]
    %v245 = vld [vmem:[#allocation8 + $0x58] sm:$0xff]
    %v246 = vld [vmem:[#allocation8 + $0x60] sm:$0xff]
    %v247 = vld [vmem:[#allocation8 + $0x68] sm:$0xff]
    %v248 = vld [vmem:[#allocation8 + $0x70] sm:$0xff]
    %v249 = vld [vmem:[#allocation8 + $0x78] sm:$0xff]
    %v250 = vld [vmem:[%s7] sm:$0x1]
    %v252 = vlaneseq
    %v253 = vshrl.u32 %v252, 7
    %v254 = vsub.s32 0, %v253
    %v255 = vrot.slane %v250, %v254
    %257 = vmatprep.subr.mxu0 0.0
    %258 = vmatpush1.msra.mxu0 %v234
    %259 = vmatprep.subr.mxu0 0.0
    %260 = vmatpush1.msra.mxu0 %v235
    %261 = vmatprep.subr.mxu0 0.0
    %262 = vmatpush1.msra.mxu0 %v236
    %263 = vmatprep.subr.mxu0 0.0
    %264 = vmatpush1.msra.mxu0 %v237
    %265 = vmatprep.subr.mxu0 0.0
    %266 = vmatpush1.msra.mxu0 %v238
    %267 = vmatprep.subr.mxu0 0.0
    %268 = vmatpush1.msra.mxu0 %v239
    %269 = vmatprep.subr.mxu0 0.0
    %270 = vmatpush1.msra.mxu0 %v240
    %271 = vmatprep.subr.mxu0 0.0
    %272 = vmatpush1.msra.mxu0 %v241
    %273 = vmatprep.subr.mxu0 0.0
    %274 = vmatpush1.msra.mxu0 %v242
    %275 = vmatprep.subr.mxu0 0.0
    %276 = vmatpush1.msra.mxu0 %v243
    %277 = vmatprep.subr.mxu0 0.0
    %278 = vmatpush1.msra.mxu0 %v244
    %279 = vmatprep.subr.mxu0 0.0
    %280 = vmatpush1.msra.mxu0 %v245
    %281 = vmatprep.subr.mxu0 0.0
    %282 = vmatpush1.msra.mxu0 %v246
    %283 = vmatprep.subr.mxu0 0.0
    %284 = vmatpush1.msra.mxu0 %v247
    %285 = vmatprep.subr.mxu0 0.0
    %286 = vmatpush1.msra.mxu0 %v248
    %287 = vmatprep.subr.mxu0 0.0
    %288 = vmatpush1.msra.mxu0 %v249
    %289 = vmatprep.subr.mxu0 0.0
    %290 = vmatpush1.msra.mxu0 0.0
    %291 = vmatprep.subr.mxu0 0.0
    %292 = vmatpush1.msra.mxu0 0.0
    %293 = vmatprep.subr.mxu0 0.0
    %294 = vmatpush1.msra.mxu0 0.0
    %295 = vmatprep.subr.mxu0 0.0
    %296 = vmatpush1.msra.mxu0 0.0
    %297 = vmatprep.subr.mxu0 0.0
    %298 = vmatpush1.msra.mxu0 0.0
    %299 = vmatprep.subr.mxu0 0.0
    %300 = vmatpush1.msra.mxu0 0.0
    %301 = vmatprep.subr.mxu0 0.0
    %302 = vmatpush1.msra.mxu0 0.0
    %303 = vmatprep.subr.mxu0 0.0
    %304 = vmatpush1.msra.mxu0 0.0
    %305 = vmatprep.subr.mxu0 0.0
    %306 = vmatpush1.msra.mxu0 0.0
    %307 = vmatprep.subr.mxu0 0.0
    %308 = vmatpush1.msra.mxu0 0.0
    %309 = vmatprep.subr.mxu0 0.0
    %310 = vmatpush1.msra.mxu0 0.0
    %311 = vmatprep.subr.mxu0 0.0
    %312 = vmatpush1.msra.mxu0 0.0
    %313 = vmatprep.subr.mxu0 0.0
    %314 = vmatpush1.msra.mxu0 0.0
    %315 = vmatprep.subr.mxu0 0.0
    %316 = vmatpush1.msra.mxu0 0.0
    %317 = vmatprep.subr.mxu0 0.0
    %318 = vmatpush1.msra.mxu0 0.0
    %319 = vmatprep.subr.mxu0 0.0
    %320 = vmatpush1.msra.mxu0 0.0
    %321 = vmatprep.mubr.f32.mxu0 0.0
    %322 = vmatmul.mubr.f32.gmra.mrb[0].mxu0 %v232
    %v323 = vpop.f32.mrb[0].mxu0
    %v324 = vadd.f32 %v255, %v323
    %v325 = vpop.f32.mrb[0].mxu0
    %326 = vmatprep.mubr.f32.mxu0 0.0
    %327 = vmatmul.mubr.f32.gmra.mrb[0].mxu0 %v233
    %v328 = vpop.f32.mrb[0].mxu0
    %v329 = vadd.f32 %v255, %v328
    %v330 = vpop.f32.mrb[0].mxu0
    %331 = vdwg.mxu0
    %v332 = vmax.f32 %v324, 0.0
    %v333 = vmax.f32 %v329, 0.0
    %v334 = vadd.f32 %v83, %v332
    %v335 = vadd.f32 %v84, %v333
    %336 = vst [vmem:[#allocation10] sm:$0xff] %v334
    %337 = vst [vmem:[#allocation10 + $0x8] sm:$0xff] %v335
    // Predicated region
    $region50: #{tpu_custom_call.1} parent=1 // pred_check
      _
    $region51: #{tpu_custom_call.1} parent=1 // pred_check_branch
      %339 = sbr.rel (0) target = $region53
    $region52: #{tpu_custom_call.1} parent=1 // pred_region
      %s341 = ssub.s32 256, 256
      %342 = vsyncadd [#allocation4], %s341
      %s343 = sshll.u32 [#allocation10], 4
      %s344 = int_to_ptr.vmem [resolvable:$true] %s343
      %349 = dma.vmem_to_hbm [thread:$0]  %s344, 256, %s8, [#allocation4], 128, 128, 8
    $region53: #{tpu_custom_call.1} parent=1 // pred_fallthru
      _
    // Predicated region
    $region54: #{tpu_custom_call.1} parent=1 // pred_check
      _
    $region55: #{tpu_custom_call.1} parent=1 // pred_check_branch
      %351 = sbr.rel (0) target = $region57
    $region56: #{tpu_custom_call.1} parent=1 // pred_region
      %352 = dma.done [#allocation4], 256
    $region57: #{tpu_custom_call.1} parent=1 // pred_fallthru
      _
    %353 = vsyncpa [#allocation3], 1
    %354 = vsyncpa [#allocation6], 1
    %355 = vsyncpa [#allocation9], 1
    %356 = vsyncpa [#allocation4], 1

</llo_original>
